<compile_context>
chip_gen: v7x
topology: tpu7x:2x2x1
jax: 0.10.0
libtpu: 0.0.40
codegen_flags: <defaults>
</compile_context>

<pallas_src>
import numpy as np
import jax
import jax.numpy as jnp
from jax.experimental import pallas as pl
from jax.experimental.pallas import tpu as pltpu


# ----------------------------------------------------------------------------
# Interpolation matrices (align_corners=True bilinear, matching F.interpolate)
# ----------------------------------------------------------------------------
def interp_matrix(n_out, n_in):
    """1-D linear interpolation matrix for align_corners=True."""
    m = np.zeros((n_out, n_in), dtype=np.float64)
    if n_out == 1:
        m[0, 0] = 1.0
        return m.astype(np.float32)
    src = np.arange(n_out, dtype=np.float64) * (n_in - 1) / (n_out - 1)
    i0 = np.clip(np.floor(src).astype(np.int64), 0, n_in - 1)
    i1 = np.minimum(i0 + 1, n_in - 1)
    frac = src - i0
    rows = np.arange(n_out)
    np.add.at(m, (rows, i0), 1.0 - frac)
    np.add.at(m, (rows, i1), frac)
    return m.astype(np.float32)


def kron_resize_matrix_T(hout, wout, hin, win):
    """(Hin*Win, Hout*Wout) matrix K^T with K = kron(Rh, Rw).

    Row index  hi*Win + wi  matches the flattened (C, h*Win + w) activation
    layout; column index ho*Wout + wo matches the flattened output layout.
    """
    rh = interp_matrix(hout, hin)           # (Hout, Hin)
    rw = interp_matrix(wout, win)           # (Wout, Win)
    k = np.kron(rh, rw)                     # (Hout*Wout, Hin*Win)
    return jnp.asarray(k.T, dtype=jnp.float32)


# ----------------------------------------------------------------------------
# Kernel
# ----------------------------------------------------------------------------
def make_frcm_kernel(n_sides, cout, side_shapes, out_hw, matmul_dtype):
    """Builds the fused per-sample kernel.

    Argument layout (per grid step over the batch):
      p_ref                     : (Cout, 5+S) packed per-channel params
                                   cols: gn_w, gn_b, prelu_a, fused_b,
                                         fused_prelu_a, red_b[0..S-1]
      per side i: x_i (1, Cin_i, Hin_i*Win_i)
                  w_i (Cout, Cin_i)             1x1 reduce conv weight
                  kt_i (Hin_i*Win_i, Hout*Wout) kron(Rh,Rw)^T resize matrix
                  wf_i (Cout, Cout)             side i slice of fusion conv
      out_ref                   : (1, (S+1)*Cout, Hout*Wout)   lane-dense
    """
    hout, wout = out_hw
    hwout = hout * wout
    eps = 1e-5
    md = matmul_dtype

    def kernel(p_ref, *rest):
        out_ref = rest[4 * n_sides]

        gamma = p_ref[:, 0:1]          # GroupNorm weight        (Cout, 1)
        beta = p_ref[:, 1:2]           # GroupNorm bias
        alpha = p_ref[:, 2:3]          # shared PReLU slope
        fused_b = p_ref[:, 3:4]        # fusion conv bias
        fused_a = p_ref[:, 4:5]        # fusion PReLU slope

        # One lane-dense fused-head accumulator (Cout, Hout*Wout), f32.
        fused_acc = jnp.zeros((cout, hwout), jnp.float32)

        for i, (_cin, hin, win) in enumerate(side_shapes):
            x = rest[4 * i][0]             # (Cin, Hin*Win)
            w = rest[4 * i + 1][...]       # (Cout, Cin)
            kt = rest[4 * i + 2][...]      # (Hin*Win, Hout*Wout)
            wf = rest[4 * i + 3][...]      # (Cout, Cout)
            bias = p_ref[:, 5 + i:6 + i]   # (Cout, 1) this side's conv bias

            # 1x1 conv as (Cout, Cin) @ (Cin, HW) on the MXU, lane-dense.
            y = jnp.dot(w.astype(md), x.astype(md),
                        preferred_element_type=jnp.float32) + bias

            # GroupNorm(1, C): per-sample stats over all channels & pixels,
            # two-pass (centered) variance for stability.
            n_el = float(cout * hin * win)
            mean = jnp.sum(y) / n_el
            yc = y - mean
            var = jnp.sum(yc * yc) / n_el
            yn = yc * (jax.lax.rsqrt(var + eps) * gamma) + beta

            # Per-channel PReLU (VPU, f32).
            act = jnp.where(yn >= 0.0, yn, alpha * yn)

            # Bilinear resize of all channels in ONE matmul:
            # (Cout, HWin) @ (HWin, HWout) -> (Cout, HWout).
            late = jnp.dot(act.astype(md), kt.astype(md),
                           preferred_element_type=jnp.float32)

            # Lane-dense slab store for this side's output channels.
            out_ref[0, i * cout:(i + 1) * cout, :] = late

            # Fusion-head contribution at OUTPUT resolution (1x1 conv).
            fused_acc = fused_acc + jnp.dot(wf.astype(md), late.astype(md),
                                            preferred_element_type=jnp.float32)

        # Fusion head finalize: bias + per-channel PReLU, one slab store.
        v = fused_acc + fused_b
        out_ref[0, n_sides * cout:, :] = jnp.where(v >= 0.0, v, fused_a * v)

    return kernel


# ----------------------------------------------------------------------------
# Wrapper
# ----------------------------------------------------------------------------
def frcm_forward(sides_nchw, img_shape, params, matmul_dtype=jnp.float32):
    """Equivalent of FRCM.forward(sides, img_shape); returns NCHW output.

    matmul_dtype=jnp.bfloat16 enables native-MXU bf16 matmuls (f32 accumulate)
    for v5e/v6e/v7x; default f32 keeps the tightest numerics.
    """
    n_sides = len(sides_nchw)
    N = sides_nchw[0].shape[0]
    hout, wout = img_shape
    hwout = hout * wout
    cout = params["gn_w"].shape[0]
    ctot = cout * (n_sides + 1)

    # Pack all per-channel parameter vectors as columns of a single block.
    pcols = [params["gn_w"], params["gn_b"], params["prelu_a"],
             params["fused_b"], params["fused_prelu_a"]] + list(params["red_b"])
    packed = jnp.stack(pcols, axis=1).astype(jnp.float32)   # (Cout, 5 + S)

    operands = [packed]
    in_specs = [pl.BlockSpec((cout, 5 + n_sides), lambda n: (0, 0))]
    side_shapes = []
    for i, x in enumerate(sides_nchw):
        _, cin, hin, win = x.shape
        side_shapes.append((cin, hin, win))
        kt = kron_resize_matrix_T(hout, wout, hin, win)       # (HWin, HWout)
        wf_i = params["fused_w"][:, i * cout:(i + 1) * cout]  # (Cout, Cout)
        operands += [x.reshape(N, cin, hin * win).astype(jnp.float32),
                     params["red_w"][i].astype(jnp.float32),
                     kt,
                     wf_i.astype(jnp.float32)]
        # All grid-invariant operands keep constant index maps; at these sizes
        # default double-buffering is a negligible VMEM cost.
        in_specs += [
            pl.BlockSpec((1, cin, hin * win), lambda n: (n, 0, 0)),
            pl.BlockSpec((cout, cin), lambda n: (0, 0)),
            pl.BlockSpec((hin * win, hwout), lambda n: (0, 0)),
            pl.BlockSpec((cout, cout), lambda n: (0, 0)),
        ]

    kernel = make_frcm_kernel(n_sides, cout, tuple(side_shapes),
                              (hout, wout), matmul_dtype)

    out_flat = pl.pallas_call(
        kernel,
        out_shape=jax.ShapeDtypeStruct((N, ctot, hwout), jnp.float32),
        grid=(N,),
        in_specs=in_specs,
        out_specs=pl.BlockSpec((1, ctot, hwout), lambda n: (n, 0, 0)),
        compiler_params=pltpu.CompilerParams(
            dimension_semantics=("parallel",),
            vmem_limit_bytes=32 * 1024 * 1024,
        ),
    )(*operands)

    # Lane-dense kernel output -> NCHW (pure metadata reshape, row-major).
    return out_flat.reshape(N, ctot, hout, wout)


# ----------------------------------------------------------------------------
# Pure-JAX reference (matches the PyTorch module) and parameter init
# ----------------------------------------------------------------------------
def frcm_reference(sides_nchw, img_shape, params):
    hout, wout = img_shape
    hp = jax.lax.Precision.HIGHEST
    late = []
    for i, x in enumerate(sides_nchw):
        _, _, hin, win = x.shape
        w = params["red_w"][i]
        y = jnp.einsum("oc,nchw->nohw", w, x, precision=hp)
        y = y + params["red_b"][i][None, :, None, None]
        mu = jnp.mean(y, axis=(1, 2, 3), keepdims=True)
        var = jnp.mean((y - mu) ** 2, axis=(1, 2, 3), keepdims=True)
        yn = (y - mu) / jnp.sqrt(var + 1e-5)
        yn = yn * params["gn_w"][None, :, None, None] \
            + params["gn_b"][None, :, None, None]
        a = params["prelu_a"][None, :, None, None]
        act = jnp.where(yn >= 0, yn, a * yn)
        rh = jnp.asarray(interp_matrix(hout, hin))
        rw = jnp.asarray(interp_matrix(wout, win))
        late.append(jnp.einsum("oh,pw,nchw->ncop", rh, rw, act, precision=hp))
    xcat = jnp.concatenate(late, axis=1)
    f = jnp.einsum("oc,nchw->nohw", params["fused_w"], xcat, precision=hp)
    f = f + params["fused_b"][None, :, None, None]
    fa = params["fused_prelu_a"][None, :, None, None]
    f = jnp.where(f >= 0, f, fa * f)
    return jnp.concatenate(late + [f], axis=1)


def init_params(ch_ins, ch_out, key):
    ks = jax.random.split(key, 2 * len(ch_ins) + 2)
    params = {
        "red_w": [], "red_b": [],
        # GroupNorm default init (weight=1, bias=0)
        "gn_w": jnp.ones((ch_out,), jnp.float32),
        "gn_b": jnp.zeros((ch_out,), jnp.float32),
        # PReLU(num_parameters=ch_out, init=0.05)
        "prelu_a": jnp.full((ch_out,), 0.05, jnp.float32),
        "fused_prelu_a": jnp.full((ch_out,), 0.05, jnp.float32),
    }
    for i, cin in enumerate(ch_ins):
        params["red_w"].append(
            0.1 * jax.random.normal(ks[2 * i], (ch_out, cin), jnp.float32))
        params["red_b"].append(
            0.1 * jax.random.normal(ks[2 * i + 1], (ch_out,), jnp.float32))
    params["fused_w"] = 0.1 * jax.random.normal(
        ks[-2], (ch_out, ch_out * len(ch_ins)), jnp.float32)
    params["fused_b"] = 0.1 * jax.random.normal(ks[-1], (ch_out,), jnp.float32)
    return params


# ----------------------------------------------------------------------------
if __name__ == "__main__":
    ch_ins = [4, 8]
    ch_out = 8
    N = 2
    img_shape = (16, 16)

    key = jax.random.PRNGKey(0)
    k_in0, k_in1, k_par = jax.random.split(key, 3)
    # Multi-scale feature maps (NCHW, like the PyTorch module).
    sides = [
        jax.random.normal(k_in0, (N, ch_ins[0], 16, 16), jnp.float32),
        jax.random.normal(k_in1, (N, ch_ins[1], 8, 8), jnp.float32),
    ]
    params = init_params(ch_ins, ch_out, k_par)

    out = frcm_forward(sides, img_shape, params)
    out = jax.block_until_ready(out)

    expected_shape = (N, ch_out * (len(ch_ins) + 1), img_shape[0], img_shape[1])
    assert out.shape == expected_shape, (out.shape, expected_shape)
    assert bool(jnp.all(jnp.isfinite(out)))

    # Validate forward semantics against a pure-JAX reference of the module.
    ref = frcm_reference(sides, img_shape, params)
    max_err = float(jnp.max(jnp.abs(out - ref)))
    assert max_err < 1e-3, max_err

    print("KERNEL_OK")
</pallas_src>

<mosaic_0001>
module attributes {stable_mosaic.version = 11 : i64} {
  func.func @kernel(%arg0: i32, %arg1: memref<8x7xf32, #tpu.memory_space<vmem>>, %arg2: memref<1x4x256xf32, #tpu.memory_space<vmem>>, %arg3: memref<8x4xf32, #tpu.memory_space<vmem>>, %arg4: memref<256x256xf32, #tpu.memory_space<vmem>>, %arg5: memref<8x8xf32, #tpu.memory_space<vmem>>, %arg6: memref<1x8x64xf32, #tpu.memory_space<vmem>>, %arg7: memref<8x8xf32, #tpu.memory_space<vmem>>, %arg8: memref<64x256xf32, #tpu.memory_space<vmem>>, %arg9: memref<8x8xf32, #tpu.memory_space<vmem>>, %arg10: memref<1x24x256xf32, #tpu.memory_space<vmem>>) attributes {dimension_semantics = [#tpu.dimension_semantics<parallel>], iteration_bounds = array<i64: 2>, scalar_prefetch = 0 : i64, scratch_operands = 0 : i64, tpu.core_type = #tpu.core_type<tc>, window_params = [{pipeline_mode = #tpu.pipeline_mode<synchronous>, transform_indices = @transform_0, window_bounds = array<i64: 8, 7>}, {transform_indices = @transform_1, window_bounds = array<i64: 1, 4, 256>}, {pipeline_mode = #tpu.pipeline_mode<synchronous>, transform_indices = @transform_2, window_bounds = array<i64: 8, 4>}, {pipeline_mode = #tpu.pipeline_mode<synchronous>, transform_indices = @transform_3, window_bounds = array<i64: 256, 256>}, {pipeline_mode = #tpu.pipeline_mode<synchronous>, transform_indices = @transform_4, window_bounds = array<i64: 8, 8>}, {transform_indices = @transform_5, window_bounds = array<i64: 1, 8, 64>}, {pipeline_mode = #tpu.pipeline_mode<synchronous>, transform_indices = @transform_6, window_bounds = array<i64: 8, 8>}, {pipeline_mode = #tpu.pipeline_mode<synchronous>, transform_indices = @transform_7, window_bounds = array<i64: 64, 256>}, {pipeline_mode = #tpu.pipeline_mode<synchronous>, transform_indices = @transform_8, window_bounds = array<i64: 8, 8>}, {transform_indices = @transform_9, window_bounds = array<i64: 1, 24, 256>}]} {
    %c0 = arith.constant 0 : index
    %c0_0 = arith.constant 0 : index
    %0 = vector.load %arg1[%c0, %c0_0] : memref<8x7xf32, #tpu.memory_space<vmem>>, vector<8x1xf32>
    %c0_1 = arith.constant 0 : index
    %c1 = arith.constant 1 : index
    %1 = vector.load %arg1[%c0_1, %c1] : memref<8x7xf32, #tpu.memory_space<vmem>>, vector<8x1xf32>
    %c0_2 = arith.constant 0 : index
    %c2 = arith.constant 2 : index
    %2 = vector.load %arg1[%c0_2, %c2] : memref<8x7xf32, #tpu.memory_space<vmem>>, vector<8x1xf32>
    %c0_3 = arith.constant 0 : index
    %c3 = arith.constant 3 : index
    %3 = vector.load %arg1[%c0_3, %c3] : memref<8x7xf32, #tpu.memory_space<vmem>>, vector<8x1xf32>
    %c0_4 = arith.constant 0 : index
    %c4 = arith.constant 4 : index
    %4 = vector.load %arg1[%c0_4, %c4] : memref<8x7xf32, #tpu.memory_space<vmem>>, vector<8x1xf32>
    %cst = arith.constant 0.000000e+00 : f32
    %5 = vector.broadcast %cst : f32 to vector<8x256xf32>
    %c0_5 = arith.constant 0 : index
    %c0_6 = arith.constant 0 : index
    %c0_7 = arith.constant 0 : index
    %6 = vector.load %arg2[%c0_5, %c0_6, %c0_7] : memref<1x4x256xf32, #tpu.memory_space<vmem>>, vector<1x4x256xf32>
    %7 = vector.shape_cast %6 : vector<1x4x256xf32> to vector<4x256xf32>
    %c0_8 = arith.constant 0 : index
    %c0_9 = arith.constant 0 : index
    %8 = vector.load %arg3[%c0_8, %c0_9] : memref<8x4xf32, #tpu.memory_space<vmem>>, vector<8x4xf32>
    %c0_10 = arith.constant 0 : index
    %c0_11 = arith.constant 0 : index
    %9 = vector.load %arg4[%c0_10, %c0_11] : memref<256x256xf32, #tpu.memory_space<vmem>>, vector<256x256xf32>
    %c0_12 = arith.constant 0 : index
    %c0_13 = arith.constant 0 : index
    %10 = vector.load %arg5[%c0_12, %c0_13] : memref<8x8xf32, #tpu.memory_space<vmem>>, vector<8x8xf32>
    %c0_14 = arith.constant 0 : index
    %c5 = arith.constant 5 : index
    %11 = vector.load %arg1[%c0_14, %c5] : memref<8x7xf32, #tpu.memory_space<vmem>>, vector<8x1xf32>
    %cst_15 = arith.constant dense<0.000000e+00> : vector<8x256xf32>
    %12 = tpu.matmul %8, %7, %cst_15 {dimension_numbers = #tpu.dot_dimension_numbers<[1], [0], [0], [1], [0, 0, 1, 1], [], []>} : vector<8x4xf32>, vector<4x256xf32>, vector<8x256xf32> -> vector<8x256xf32>
    %13 = vector.broadcast %11 : vector<8x1xf32> to vector<8x256xf32>
    %14 = arith.addf %12, %13 : vector<8x256xf32>
    %15 = vector.shape_cast %14 : vector<8x256xf32> to vector<1x8x256xf32>
    %cst_16 = arith.constant dense<0.000000e+00> : vector<1xf32>
    %16 = vector.multi_reduction <add>, %15, %cst_16 [1, 2] : vector<1x8x256xf32> to vector<1xf32>
    %17 = vector.shape_cast %16 : vector<1xf32> to vector<1x1x1xf32>
    %18 = vector.extract %17[0, 0, 0] : f32 from vector<1x1x1xf32>
    %cst_17 = arith.constant 2.048000e+03 : f32
    %19 = arith.divf %18, %cst_17 : f32
    %20 = vector.broadcast %19 : f32 to vector<8x256xf32>
    %21 = arith.subf %14, %20 : vector<8x256xf32>
    %22 = arith.mulf %21, %21 : vector<8x256xf32>
    %23 = vector.shape_cast %22 : vector<8x256xf32> to vector<1x8x256xf32>
    %cst_18 = arith.constant dense<0.000000e+00> : vector<1xf32>
    %24 = vector.multi_reduction <add>, %23, %cst_18 [1, 2] : vector<1x8x256xf32> to vector<1xf32>
    %25 = vector.shape_cast %24 : vector<1xf32> to vector<1x1x1xf32>
    %26 = vector.extract %25[0, 0, 0] : f32 from vector<1x1x1xf32>
    %cst_19 = arith.constant 2.048000e+03 : f32
    %27 = arith.divf %26, %cst_19 : f32
    %cst_20 = arith.constant 9.99999974E-6 : f32
    %28 = arith.addf %27, %cst_20 : f32
    %29 = math.rsqrt %28 : f32
    %30 = vector.broadcast %29 : f32 to vector<8x1xf32>
    %31 = arith.mulf %30, %0 : vector<8x1xf32>
    %32 = vector.broadcast %31 : vector<8x1xf32> to vector<8x256xf32>
    %33 = arith.mulf %21, %32 : vector<8x256xf32>
    %34 = vector.broadcast %1 : vector<8x1xf32> to vector<8x256xf32>
    %35 = arith.addf %33, %34 : vector<8x256xf32>
    %cst_21 = arith.constant 0.000000e+00 : f32
    %36 = vector.broadcast %cst_21 : f32 to vector<8x256xf32>
    %37 = arith.cmpf oge, %35, %36 : vector<8x256xf32>
    %38 = vector.broadcast %2 : vector<8x1xf32> to vector<8x256xf32>
    %39 = arith.mulf %38, %35 : vector<8x256xf32>
    %40 = arith.select %37, %35, %39 : vector<8x256xi1>, vector<8x256xf32>
    %cst_22 = arith.constant dense<0.000000e+00> : vector<8x256xf32>
    %41 = tpu.matmul %40, %9, %cst_22 {dimension_numbers = #tpu.dot_dimension_numbers<[1], [0], [0], [1], [0, 0, 1, 1], [], []>} : vector<8x256xf32>, vector<256x256xf32>, vector<8x256xf32> -> vector<8x256xf32>
    %c0_23 = arith.constant 0 : index
    %c0_24 = arith.constant 0 : index
    %c0_25 = arith.constant 0 : index
    %42 = vector.load %arg10[%c0_23, %c0_24, %c0_25] : memref<1x24x256xf32, #tpu.memory_space<vmem>>, vector<1x8x256xf32>
    %43 = vector.shape_cast %42 : vector<1x8x256xf32> to vector<8x256xf32>
    %44 = vector.shape_cast %41 : vector<8x256xf32> to vector<1x8x256xf32>
    tpu.vector_store %arg10[%c0_23, %c0_24, %c0_25], %44 {strides = array<i32>} : memref<1x24x256xf32, #tpu.memory_space<vmem>>, vector<1x8x256xf32>,
    %cst_26 = arith.constant dense<0.000000e+00> : vector<8x256xf32>
    %45 = tpu.matmul %10, %41, %cst_26 {dimension_numbers = #tpu.dot_dimension_numbers<[1], [0], [0], [1], [0, 0, 1, 1], [], []>} : vector<8x8xf32>, vector<8x256xf32>, vector<8x256xf32> -> vector<8x256xf32>
    %46 = arith.addf %5, %45 : vector<8x256xf32>
    %c0_27 = arith.constant 0 : index
    %c0_28 = arith.constant 0 : index
    %c0_29 = arith.constant 0 : index
    %47 = vector.load %arg6[%c0_27, %c0_28, %c0_29] : memref<1x8x64xf32, #tpu.memory_space<vmem>>, vector<1x8x64xf32>
    %48 = vector.shape_cast %47 : vector<1x8x64xf32> to vector<8x64xf32>
    %c0_30 = arith.constant 0 : index
    %c0_31 = arith.constant 0 : index
    %49 = vector.load %arg7[%c0_30, %c0_31] : memref<8x8xf32, #tpu.memory_space<vmem>>, vector<8x8xf32>
    %c0_32 = arith.constant 0 : index
    %c0_33 = arith.constant 0 : index
    %50 = vector.load %arg8[%c0_32, %c0_33] : memref<64x256xf32, #tpu.memory_space<vmem>>, vector<64x256xf32>
    %c0_34 = arith.constant 0 : index
    %c0_35 = arith.constant 0 : index
    %51 = vector.load %arg9[%c0_34, %c0_35] : memref<8x8xf32, #tpu.memory_space<vmem>>, vector<8x8xf32>
    %c0_36 = arith.constant 0 : index
    %c6 = arith.constant 6 : index
    %52 = vector.load %arg1[%c0_36, %c6] : memref<8x7xf32, #tpu.memory_space<vmem>>, vector<8x1xf32>
    %cst_37 = arith.constant dense<0.000000e+00> : vector<8x64xf32>
    %53 = tpu.matmul %49, %48, %cst_37 {dimension_numbers = #tpu.dot_dimension_numbers<[1], [0], [0], [1], [0, 0, 1, 1], [], []>} : vector<8x8xf32>, vector<8x64xf32>, vector<8x64xf32> -> vector<8x64xf32>
    %54 = vector.broadcast %52 : vector<8x1xf32> to vector<8x64xf32>
    %55 = arith.addf %53, %54 : vector<8x64xf32>
    %56 = vector.shape_cast %55 : vector<8x64xf32> to vector<1x8x64xf32>
    %cst_38 = arith.constant dense<0.000000e+00> : vector<1xf32>
    %57 = vector.multi_reduction <add>, %56, %cst_38 [1, 2] : vector<1x8x64xf32> to vector<1xf32>
    %58 = vector.shape_cast %57 : vector<1xf32> to vector<1x1x1xf32>
    %59 = vector.extract %58[0, 0, 0] : f32 from vector<1x1x1xf32>
    %cst_39 = arith.constant 5.120000e+02 : f32
    %60 = arith.divf %59, %cst_39 : f32
    %61 = vector.broadcast %60 : f32 to vector<8x64xf32>
    %62 = arith.subf %55, %61 : vector<8x64xf32>
    %63 = arith.mulf %62, %62 : vector<8x64xf32>
    %64 = vector.shape_cast %63 : vector<8x64xf32> to vector<1x8x64xf32>
    %cst_40 = arith.constant dense<0.000000e+00> : vector<1xf32>
    %65 = vector.multi_reduction <add>, %64, %cst_40 [1, 2] : vector<1x8x64xf32> to vector<1xf32>
    %66 = vector.shape_cast %65 : vector<1xf32> to vector<1x1x1xf32>
    %67 = vector.extract %66[0, 0, 0] : f32 from vector<1x1x1xf32>
    %cst_41 = arith.constant 5.120000e+02 : f32
    %68 = arith.divf %67, %cst_41 : f32
    %cst_42 = arith.constant 9.99999974E-6 : f32
    %69 = arith.addf %68, %cst_42 : f32
    %70 = math.rsqrt %69 : f32
    %71 = vector.broadcast %70 : f32 to vector<8x1xf32>
    %72 = arith.mulf %71, %0 : vector<8x1xf32>
    %73 = vector.broadcast %72 : vector<8x1xf32> to vector<8x64xf32>
    %74 = arith.mulf %62, %73 : vector<8x64xf32>
    %75 = vector.broadcast %1 : vector<8x1xf32> to vector<8x64xf32>
    %76 = arith.addf %74, %75 : vector<8x64xf32>
    %cst_43 = arith.constant 0.000000e+00 : f32
    %77 = vector.broadcast %cst_43 : f32 to vector<8x64xf32>
    %78 = arith.cmpf oge, %76, %77 : vector<8x64xf32>
    %79 = vector.broadcast %2 : vector<8x1xf32> to vector<8x64xf32>
    %80 = arith.mulf %79, %76 : vector<8x64xf32>
    %81 = arith.select %78, %76, %80 : vector<8x64xi1>, vector<8x64xf32>
    %cst_44 = arith.constant dense<0.000000e+00> : vector<8x256xf32>
    %82 = tpu.matmul %81, %50, %cst_44 {dimension_numbers = #tpu.dot_dimension_numbers<[1], [0], [0], [1], [0, 0, 1, 1], [], []>} : vector<8x64xf32>, vector<64x256xf32>, vector<8x256xf32> -> vector<8x256xf32>
    %c0_45 = arith.constant 0 : index
    %c8 = arith.constant 8 : index
    %c0_46 = arith.constant 0 : index
    %83 = vector.load %arg10[%c0_45, %c8, %c0_46] : memref<1x24x256xf32, #tpu.memory_space<vmem>>, vector<1x8x256xf32>
    %84 = vector.shape_cast %83 : vector<1x8x256xf32> to vector<8x256xf32>
    %85 = vector.shape_cast %82 : vector<8x256xf32> to vector<1x8x256xf32>
    tpu.vector_store %arg10[%c0_45, %c8, %c0_46], %85 {strides = array<i32>} : memref<1x24x256xf32, #tpu.memory_space<vmem>>, vector<1x8x256xf32>,
    %cst_47 = arith.constant dense<0.000000e+00> : vector<8x256xf32>
    %86 = tpu.matmul %51, %82, %cst_47 {dimension_numbers = #tpu.dot_dimension_numbers<[1], [0], [0], [1], [0, 0, 1, 1], [], []>} : vector<8x8xf32>, vector<8x256xf32>, vector<8x256xf32> -> vector<8x256xf32>
    %87 = arith.addf %46, %86 : vector<8x256xf32>
    %88 = vector.broadcast %3 : vector<8x1xf32> to vector<8x256xf32>
    %89 = arith.addf %87, %88 : vector<8x256xf32>
    %cst_48 = arith.constant 0.000000e+00 : f32
    %90 = vector.broadcast %cst_48 : f32 to vector<8x256xf32>
    %91 = arith.cmpf oge, %89, %90 : vector<8x256xf32>
    %92 = vector.broadcast %4 : vector<8x1xf32> to vector<8x256xf32>
    %93 = arith.mulf %92, %89 : vector<8x256xf32>
    %94 = arith.select %91, %89, %93 : vector<8x256xi1>, vector<8x256xf32>
    %c0_49 = arith.constant 0 : index
    %c16 = arith.constant 16 : index
    %c0_50 = arith.constant 0 : index
    %95 = vector.load %arg10[%c0_49, %c16, %c0_50] : memref<1x24x256xf32, #tpu.memory_space<vmem>>, vector<1x8x256xf32>
    %96 = vector.shape_cast %95 : vector<1x8x256xf32> to vector<8x256xf32>
    %97 = vector.shape_cast %94 : vector<8x256xf32> to vector<1x8x256xf32>
    tpu.vector_store %arg10[%c0_49, %c16, %c0_50], %97 {strides = array<i32>} : memref<1x24x256xf32, #tpu.memory_space<vmem>>, vector<1x8x256xf32>,
    return
  }
  func.func @transform_0(%arg0: i32) -> (i32, i32) {
    %c0_i32 = arith.constant 0 : i32
    %c0_i32_0 = arith.constant 0 : i32
    %c0_i32_1 = arith.constant 0 : i32
    return %c0_i32, %c0_i32_0 : i32, i32
  }
  func.func @transform_1(%arg0: i32) -> (i32, i32, i32) {
    %c0_i32 = arith.constant 0 : i32
    %c0_i32_0 = arith.constant 0 : i32
    %c0_i32_1 = arith.constant 0 : i32
    return %arg0, %c0_i32, %c0_i32_0 : i32, i32, i32
  }
  func.func @transform_2(%arg0: i32) -> (i32, i32) {
    %c0_i32 = arith.constant 0 : i32
    %c0_i32_0 = arith.constant 0 : i32
    %c0_i32_1 = arith.constant 0 : i32
    return %c0_i32, %c0_i32_0 : i32, i32
  }
  func.func @transform_3(%arg0: i32) -> (i32, i32) {
    %c0_i32 = arith.constant 0 : i32
    %c0_i32_0 = arith.constant 0 : i32
    %c0_i32_1 = arith.constant 0 : i32
    return %c0_i32, %c0_i32_0 : i32, i32
  }
  func.func @transform_4(%arg0: i32) -> (i32, i32) {
    %c0_i32 = arith.constant 0 : i32
    %c0_i32_0 = arith.constant 0 : i32
    %c0_i32_1 = arith.constant 0 : i32
    return %c0_i32, %c0_i32_0 : i32, i32
  }
  func.func @transform_5(%arg0: i32) -> (i32, i32, i32) {
    %c0_i32 = arith.constant 0 : i32
    %c0_i32_0 = arith.constant 0 : i32
    %c0_i32_1 = arith.constant 0 : i32
    return %arg0, %c0_i32, %c0_i32_0 : i32, i32, i32
  }
  func.func @transform_6(%arg0: i32) -> (i32, i32) {
    %c0_i32 = arith.constant 0 : i32
    %c0_i32_0 = arith.constant 0 : i32
    %c0_i32_1 = arith.constant 0 : i32
    return %c0_i32, %c0_i32_0 : i32, i32
  }
  func.func @transform_7(%arg0: i32) -> (i32, i32) {
    %c0_i32 = arith.constant 0 : i32
    %c0_i32_0 = arith.constant 0 : i32
    %c0_i32_1 = arith.constant 0 : i32
    return %c0_i32, %c0_i32_0 : i32, i32
  }
  func.func @transform_8(%arg0: i32) -> (i32, i32) {
    %c0_i32 = arith.constant 0 : i32
    %c0_i32_0 = arith.constant 0 : i32
    %c0_i32_1 = arith.constant 0 : i32
    return %c0_i32, %c0_i32_0 : i32, i32
  }
  func.func @transform_9(%arg0: i32) -> (i32, i32, i32) {
    %c0_i32 = arith.constant 0 : i32
    %c0_i32_0 = arith.constant 0 : i32
    %c0_i32_1 = arith.constant 0 : i32
    return %arg0, %c0_i32, %c0_i32_0 : i32, i32, i32
  }
}

</mosaic_0001>

<llo_original>
// kernel: tpu_custom_call.1
$region0: #{tpu_custom_call.1}
  #allocation0 [shape = 'u32[]', space=smem, size = 0x4, offset = 0x4, fixed_abs, tag = 'smem constant byte address 0x4 - core index']
  #allocation1 [shape = 'u32[144,128]{1,0:T(1,128)}', space=vmem, size = 0x12000, scoped, tag = 'internal scratch']
  %s0 = inlined_call_operand.vmem [shape: f32[8,7], index: 0, kind: input, shape index: {}]
  %s1 = inlined_call_operand.hbm [shape: f32[2,4,256], index: 1, kind: input, shape index: {}]
  %s2 = inlined_call_operand.vmem [shape: f32[8,4], index: 2, kind: input, shape index: {}]
  %s3 = inlined_call_operand.hbm [shape: f32[256,256], index: 3, kind: input, shape index: {}]
  %s4 = inlined_call_operand.hbm [shape: f32[8,8], index: 4, kind: input, shape index: {}]
  %s5 = inlined_call_operand.vmem [shape: f32[2,8,64], index: 5, kind: input, shape index: {}]
  %s6 = inlined_call_operand.vmem [shape: f32[8,8], index: 6, kind: input, shape index: {}]
  %s7 = inlined_call_operand.hbm [shape: f32[64,256], index: 7, kind: input, shape index: {}]
  %s8 = inlined_call_operand.vmem [shape: f32[8,8], index: 8, kind: input, shape index: {}]
  %s9 = inlined_call_operand.hbm [shape: f32[2,24,256], index: 9, kind: output, shape index: {}]
  %s10 = sld [smem:[#allocation0]]
  $region85: #{tpu_custom_call.1} parent=0
    _
  %s12 = ssub.s32 1, %s10
  %s13 = scalar_select 0, %s12, %s10
  $region1: #{tpu_custom_call.1} parent=0
    #allocation2 [shape = 'u8[8192]{0}', space=vmem, size = 0x2000, scoped, tag = 'input window, operand 1']
    #allocation3 [shape = 's32[2]{0}', space=sflag, size = 0x8, scoped, tag = 'scoped memory for tpu_custom_call.1']
    #allocation4 [shape = 's32[2]{0}', space=sflag, size = 0x8, scoped, tag = 'scoped memory for tpu_custom_call.1']
    #allocation5 [shape = 'u8[262144]{0}', space=vmem, size = 0x40000, scoped, tag = 'input window, operand 3, single buffered']
    #allocation6 [shape = 's32[1]{0}', space=sflag, size = 0x4, scoped, tag = 'scoped memory for tpu_custom_call.1']
    #allocation7 [shape = 'u8[4096]{0}', space=vmem, size = 0x1000, scoped, tag = 'input window, operand 4, single buffered']
    #allocation8 [shape = 'u8[65536]{0}', space=vmem, size = 0x10000, scoped, tag = 'input window, operand 7, single buffered']
    #allocation9 [shape = 's32[1]{0}', space=sflag, size = 0x4, scoped, tag = 'scoped memory for tpu_custom_call.1']
    #allocation10 [shape = 'u8[49152]{0}', space=vmem, size = 0xc000, scoped, tag = 'output window, operand 0']
    %14 = vsyncpa [#allocation3], 0
    %s15 = scalar_lea.sflag [#allocation3], 1
    %16 = vsyncpa %s15, 0
    %17 = vsyncpa [#allocation6], 0
    %18 = vsyncpa [#allocation9], 0
    %19 = vsyncpa [#allocation4], 0
    %s20 = scalar_lea.sflag [#allocation4], 1
    %21 = vsyncpa %s20, 0
    loop: start=0, step=1, limit=4
    $region2: #{tpu_custom_call.1} parent=1 // loop_pre_header
      _
    $region3: #{tpu_custom_call.1} parent=1 // loop_header
      %s23 = sphi 0, %s27
      %p24 = scmp.ge.s32.totalorder %s23, 4
      %s31 = sphi 0, %s31
      %s33 = sphi 0, %s31
      %s34 = sphi 0, %s33
      %s48 = sphi 0, %s34
      %s54 = sphi 0, %s56
      %s57 = sphi 0, %s54
      %s58 = sphi 0, %s57
      %s74 = sphi 0, %s58
      %s78 = sphi 0, %s78
      %s80 = sphi 0, %s78
      %s81 = sphi 0, %s80
      %s95 = sphi 0, %s81
      %s99 = sphi 0, %s99
      %s101 = sphi 0, %s99
      %s102 = sphi 0, %s101
      %s116 = sphi 0, %s102
      %s120 = sphi 0, %s120
      %s122 = sphi 0, %s120
      %s123 = sphi 0, %s122
      %s137 = sphi 0, %s123
      %s143 = sphi 0, %s145
      %s146 = sphi 0, %s143
      %s147 = sphi 0, %s146
      %s163 = sphi 0, %s147
      %s167 = sphi 0, %s167
      %s169 = sphi 0, %s167
      %s170 = sphi 0, %s169
      %s184 = sphi 0, %s170
      %s188 = sphi 0, %s188
      %s190 = sphi 0, %s188
      %s191 = sphi 0, %s190
      %s205 = sphi 0, %s191
      %s209 = sphi 0, %s209
      %s211 = sphi 0, %s209
      %s212 = sphi 0, %s211
      %s226 = sphi 0, %s212
      %s232 = sphi 0, %s234
      %s235 = sphi 0, %s232
      %s236 = sphi 0, %s235
      %s252 = sphi 0, %s236
    $region4: #{tpu_custom_call.1} parent=1 // loop_header_branch
      %26 = sbr.rel (%p24) target = $region8
    $region5: #{tpu_custom_call.1} parent=1 // loop_body
      %s28 = ssub.s32 %s23, 1
      %s29 = ssub.s32 %s23, 2
      %s30 = sadd.s32 %s23, 1
      %s32 = sadd.s32 %s31, 1
      %p35 = scmp.eq.s32.totalorder %s23, 1
      %p36 = scmp.ne.s32.totalorder %s31, %s33
      %p37 = scmp.eq.s32.totalorder %s23, 0
      %p38 = por %p36, %p37
      %p39 = scmp.ne.s32.totalorder %s31, %s33
      %p40 = scmp.eq.s32.totalorder %s28, 1
      %p41 = por %p39, %p40
      %p42 = scmp.ne.s32.totalorder %s33, %s34
      %p43 = scmp.eq.s32.totalorder %s28, 0
      %p44 = por %p42, %p43
      %p45 = scmp.ne.s32.totalorder %s33, %s34
      %p46 = scmp.eq.s32.totalorder %s29, 1
      %p47 = por %p45, %p46
      %p49 = scmp.ne.s32.totalorder %s34, %s48
      %p50 = scmp.eq.s32.totalorder %s29, 0
      %p51 = por %p49, %p50
      %s52 = ssub.s32 %s23, %s30
      %p53 = scmp.eq.s32.totalorder %s52, 0
      %s55 = sadd.s32 %s54, 1
      %s56 = scalar_select %p53, %s54, %s55
      %p59 = pneg %p53
      %p60 = scmp.eq.s32.totalorder %s23, 1
      %p61 = por %p59, %p60
      %p62 = scmp.ne.s32.totalorder %s54, %s57
      %p63 = scmp.eq.s32.totalorder %s23, 0
      %p64 = por %p62, %p63
      %p65 = scmp.ne.s32.totalorder %s54, %s57
      %p66 = scmp.eq.s32.totalorder %s28, 1
      %p67 = por %p65, %p66
      %p68 = scmp.ne.s32.totalorder %s57, %s58
      %p69 = scmp.eq.s32.totalorder %s28, 0
      %p70 = por %p68, %p69
      %p71 = scmp.ne.s32.totalorder %s57, %s58
      %p72 = scmp.eq.s32.totalorder %s29, 1
      %p73 = por %p71, %p72
      %p75 = scmp.ne.s32.totalorder %s58, %s74
      %p76 = scmp.eq.s32.totalorder %s29, 0
      %p77 = por %p75, %p76
      %s79 = sadd.s32 %s78, 1
      %p82 = scmp.eq.s32.totalorder %s23, 1
      %p83 = scmp.ne.s32.totalorder %s78, %s80
      %p84 = scmp.eq.s32.totalorder %s23, 0
      %p85 = por %p83, %p84
      %p86 = scmp.ne.s32.totalorder %s78, %s80
      %p87 = scmp.eq.s32.totalorder %s28, 1
      %p88 = por %p86, %p87
      %p89 = scmp.ne.s32.totalorder %s80, %s81
      %p90 = scmp.eq.s32.totalorder %s28, 0
      %p91 = por %p89, %p90
      %p92 = scmp.ne.s32.totalorder %s80, %s81
      %p93 = scmp.eq.s32.totalorder %s29, 1
      %p94 = por %p92, %p93
      %p96 = scmp.ne.s32.totalorder %s81, %s95
      %p97 = scmp.eq.s32.totalorder %s29, 0
      %p98 = por %p96, %p97
      %s100 = sadd.s32 %s99, 1
      %p103 = scmp.eq.s32.totalorder %s23, 1
      %p104 = scmp.ne.s32.totalorder %s99, %s101
      %p105 = scmp.eq.s32.totalorder %s23, 0
      %p106 = por %p104, %p105
      %p107 = scmp.ne.s32.totalorder %s99, %s101
      %p108 = scmp.eq.s32.totalorder %s28, 1
      %p109 = por %p107, %p108
      %p110 = scmp.ne.s32.totalorder %s101, %s102
      %p111 = scmp.eq.s32.totalorder %s28, 0
      %p112 = por %p110, %p111
      %p113 = scmp.ne.s32.totalorder %s101, %s102
      %p114 = scmp.eq.s32.totalorder %s29, 1
      %p115 = por %p113, %p114
      %p117 = scmp.ne.s32.totalorder %s102, %s116
      %p118 = scmp.eq.s32.totalorder %s29, 0
      %p119 = por %p117, %p118
      %s121 = sadd.s32 %s120, 1
      %p124 = scmp.eq.s32.totalorder %s23, 1
      %p125 = scmp.ne.s32.totalorder %s120, %s122
      %p126 = scmp.eq.s32.totalorder %s23, 0
      %p127 = por %p125, %p126
      %p128 = scmp.ne.s32.totalorder %s120, %s122
      %p129 = scmp.eq.s32.totalorder %s28, 1
      %p130 = por %p128, %p129
      %p131 = scmp.ne.s32.totalorder %s122, %s123
      %p132 = scmp.eq.s32.totalorder %s28, 0
      %p133 = por %p131, %p132
      %p134 = scmp.ne.s32.totalorder %s122, %s123
      %p135 = scmp.eq.s32.totalorder %s29, 1
      %p136 = por %p134, %p135
      %p138 = scmp.ne.s32.totalorder %s123, %s137
      %p139 = scmp.eq.s32.totalorder %s29, 0
      %p140 = por %p138, %p139
      %s141 = ssub.s32 %s23, %s30
      %p142 = scmp.eq.s32.totalorder %s141, 0
      %s144 = sadd.s32 %s143, 1
      %s145 = scalar_select %p142, %s143, %s144
      %p148 = pneg %p142
      %p149 = scmp.eq.s32.totalorder %s23, 1
      %p150 = por %p148, %p149
      %p151 = scmp.ne.s32.totalorder %s143, %s146
      %p152 = scmp.eq.s32.totalorder %s23, 0
      %p153 = por %p151, %p152
      %p154 = scmp.ne.s32.totalorder %s143, %s146
      %p155 = scmp.eq.s32.totalorder %s28, 1
      %p156 = por %p154, %p155
      %p157 = scmp.ne.s32.totalorder %s146, %s147
      %p158 = scmp.eq.s32.totalorder %s28, 0
      %p159 = por %p157, %p158
      %p160 = scmp.ne.s32.totalorder %s146, %s147
      %p161 = scmp.eq.s32.totalorder %s29, 1
      %p162 = por %p160, %p161
      %p164 = scmp.ne.s32.totalorder %s147, %s163
      %p165 = scmp.eq.s32.totalorder %s29, 0
      %p166 = por %p164, %p165
      %s168 = sadd.s32 %s167, 1
      %p171 = scmp.eq.s32.totalorder %s23, 1
      %p172 = scmp.ne.s32.totalorder %s167, %s169
      %p173 = scmp.eq.s32.totalorder %s23, 0
      %p174 = por %p172, %p173
      %p175 = scmp.ne.s32.totalorder %s167, %s169
      %p176 = scmp.eq.s32.totalorder %s28, 1
      %p177 = por %p175, %p176
      %p178 = scmp.ne.s32.totalorder %s169, %s170
      %p179 = scmp.eq.s32.totalorder %s28, 0
      %p180 = por %p178, %p179
      %p181 = scmp.ne.s32.totalorder %s169, %s170
      %p182 = scmp.eq.s32.totalorder %s29, 1
      %p183 = por %p181, %p182
      %p185 = scmp.ne.s32.totalorder %s170, %s184
      %p186 = scmp.eq.s32.totalorder %s29, 0
      %p187 = por %p185, %p186
      %s189 = sadd.s32 %s188, 1
      %p192 = scmp.eq.s32.totalorder %s23, 1
      %p193 = scmp.ne.s32.totalorder %s188, %s190
      %p194 = scmp.eq.s32.totalorder %s23, 0
      %p195 = por %p193, %p194
      %p196 = scmp.ne.s32.totalorder %s188, %s190
      %p197 = scmp.eq.s32.totalorder %s28, 1
      %p198 = por %p196, %p197
      %p199 = scmp.ne.s32.totalorder %s190, %s191
      %p200 = scmp.eq.s32.totalorder %s28, 0
      %p201 = por %p199, %p200
      %p202 = scmp.ne.s32.totalorder %s190, %s191
      %p203 = scmp.eq.s32.totalorder %s29, 1
      %p204 = por %p202, %p203
      %p206 = scmp.ne.s32.totalorder %s191, %s205
      %p207 = scmp.eq.s32.totalorder %s29, 0
      %p208 = por %p206, %p207
      %s210 = sadd.s32 %s209, 1
      %p213 = scmp.eq.s32.totalorder %s23, 1
      %p214 = scmp.ne.s32.totalorder %s209, %s211
      %p215 = scmp.eq.s32.totalorder %s23, 0
      %p216 = por %p214, %p215
      %p217 = scmp.ne.s32.totalorder %s209, %s211
      %p218 = scmp.eq.s32.totalorder %s28, 1
      %p219 = por %p217, %p218
      %p220 = scmp.ne.s32.totalorder %s211, %s212
      %p221 = scmp.eq.s32.totalorder %s28, 0
      %p222 = por %p220, %p221
      %p223 = scmp.ne.s32.totalorder %s211, %s212
      %p224 = scmp.eq.s32.totalorder %s29, 1
      %p225 = por %p223, %p224
      %p227 = scmp.ne.s32.totalorder %s212, %s226
      %p228 = scmp.eq.s32.totalorder %s29, 0
      %p229 = por %p227, %p228
      %s230 = ssub.s32 %s23, %s30
      %p231 = scmp.eq.s32.totalorder %s230, 0
      %s233 = sadd.s32 %s232, 1
      %s234 = scalar_select %p231, %s232, %s233
      %p237 = pneg %p231
      %p238 = scmp.eq.s32.totalorder %s23, 1
      %p239 = por %p237, %p238
      %p240 = scmp.ne.s32.totalorder %s232, %s235
      %p241 = scmp.eq.s32.totalorder %s23, 0
      %p242 = por %p240, %p241
      %p243 = scmp.ne.s32.totalorder %s232, %s235
      %p244 = scmp.eq.s32.totalorder %s28, 1
      %p245 = por %p243, %p244
      %p246 = scmp.ne.s32.totalorder %s235, %s236
      %p247 = scmp.eq.s32.totalorder %s28, 0
      %p248 = por %p246, %p247
      %p249 = scmp.ne.s32.totalorder %s235, %s236
      %p250 = scmp.eq.s32.totalorder %s29, 1
      %p251 = por %p249, %p250
      %p253 = scmp.ne.s32.totalorder %s236, %s252
      %p254 = scmp.eq.s32.totalorder %s29, 0
      %p255 = por %p253, %p254
      %p256 = scmp.le.s32.totalorder 1, %s23
      %p257 = scmp.lt.s32.totalorder %s23, 3
      %p258 = pnand %p256, %p257
      %p259 = pneg %p258
      // Predicated region
      $region9: #{tpu_custom_call.1} parent=5 // pred_check
        _
      $region10: #{tpu_custom_call.1} parent=5 // pred_check_branch
        %261 = sbr.rel (%p258) target = $region12
      $region11: #{tpu_custom_call.1} parent=5 // pred_region
        %s262 = ssub.s32 %s23, 1
        // Predicated region
        $region13: #{tpu_custom_call.1} parent=11 // pred_check
          %p263 = pneg %p44
        $region14: #{tpu_custom_call.1} parent=11 // pred_check_branch
          %265 = sbr.rel (%p263) target = $region16
        $region15: #{tpu_custom_call.1} parent=11 // pred_region
          _
        $region16: #{tpu_custom_call.1} parent=11 // pred_fallthru
          _
        // Predicated region
        $region17: #{tpu_custom_call.1} parent=11 // pred_check
          %p266 = pneg %p91
        $region18: #{tpu_custom_call.1} parent=11 // pred_check_branch
          %268 = sbr.rel (%p266) target = $region20
        $region19: #{tpu_custom_call.1} parent=11 // pred_region
          _
        $region20: #{tpu_custom_call.1} parent=11 // pred_fallthru
          _
        // Predicated region
        $region21: #{tpu_custom_call.1} parent=11 // pred_check
          %p269 = pneg %p112
        $region22: #{tpu_custom_call.1} parent=11 // pred_check_branch
          %271 = sbr.rel (%p269) target = $region24
        $region23: #{tpu_custom_call.1} parent=11 // pred_region
          %s273 = ssub.s32 8192, 8192
          %274 = vsyncadd [#allocation6], %s273
          %s275 = sshll.u32 [#allocation5], 4
          %s276 = int_to_ptr.vmem [resolvable:$true] %s275
          %281 = dma.hbm_to_vmem [thread:$0]  %s3, 8192, %s276, [#allocation6], 256, 256, 16
        $region24: #{tpu_custom_call.1} parent=11 // pred_fallthru
          _
        // Predicated region
        $region25: #{tpu_custom_call.1} parent=11 // pred_check
          %p282 = pneg %p133
        $region26: #{tpu_custom_call.1} parent=11 // pred_check_branch
          %284 = sbr.rel (%p282) target = $region28
        $region27: #{tpu_custom_call.1} parent=11 // pred_region
          %s286 = ssub.s32 128, 128
          %287 = vsyncadd [#allocation6], %s286
          %s289 = sshll.u32 [#allocation7], 4
          %s290 = int_to_ptr.vmem [resolvable:$true] %s289
          %292 = dma.hbm_to_vmem [thread:$0]  %s4, 128, %s290, [#allocation6]
        $region28: #{tpu_custom_call.1} parent=11 // pred_fallthru
          _
        // Predicated region
        $region29: #{tpu_custom_call.1} parent=11 // pred_check
          %p293 = pneg %p180
        $region30: #{tpu_custom_call.1} parent=11 // pred_check_branch
          %295 = sbr.rel (%p293) target = $region32
        $region31: #{tpu_custom_call.1} parent=11 // pred_region
          _
        $region32: #{tpu_custom_call.1} parent=11 // pred_fallthru
          _
        // Predicated region
        $region33: #{tpu_custom_call.1} parent=11 // pred_check
          %p296 = pneg %p201
        $region34: #{tpu_custom_call.1} parent=11 // pred_check_branch
          %298 = sbr.rel (%p296) target = $region36
        $region35: #{tpu_custom_call.1} parent=11 // pred_region
          %s300 = ssub.s32 2048, 2048
          %301 = vsyncadd [#allocation9], %s300
          %s302 = sshll.u32 [#allocation8], 4
          %s303 = int_to_ptr.vmem [resolvable:$true] %s302
          %308 = dma.hbm_to_vmem [thread:$0]  %s7, 2048, %s303, [#allocation9], 256, 256, 16
        $region36: #{tpu_custom_call.1} parent=11 // pred_fallthru
          _
        // Predicated region
        $region37: #{tpu_custom_call.1} parent=11 // pred_check
          %p309 = pneg %p222
        $region38: #{tpu_custom_call.1} parent=11 // pred_check_branch
          %311 = sbr.rel (%p309) target = $region40
        $region39: #{tpu_custom_call.1} parent=11 // pred_region
          _
        $region40: #{tpu_custom_call.1} parent=11 // pred_fallthru
          _
      $region12: #{tpu_custom_call.1} parent=5 // pred_fallthru
        _
      %p312 = scmp.lt.s32.totalorder %s23, 2
      // Predicated region
      $region41: #{tpu_custom_call.1} parent=5 // pred_check
        %p313 = pneg %p312
      $region42: #{tpu_custom_call.1} parent=5 // pred_check_branch
        %315 = sbr.rel (%p313) target = $region44
      $region43: #{tpu_custom_call.1} parent=5 // pred_region
        // Predicated region
        $region45: #{tpu_custom_call.1} parent=43 // pred_check
          %p316 = pneg %p64
        $region46: #{tpu_custom_call.1} parent=43 // pred_check_branch
          %318 = sbr.rel (%p316) target = $region48
        $region47: #{tpu_custom_call.1} parent=43 // pred_region
          %s319 = sand.u32 %s54, 1
          %s320 = scalar_lea.sflag [#allocation3], %s319
          %s321 = sand.u32 %s54, 1
          %s322 = smul.addr %s321, 8
          %s323 = scalar_lea.vmem [#allocation2], %s322
          %s325 = ssub.s32 128, 128
          %326 = vsyncadd %s320, %s325
          %s327 = smul.addr %s23, 2
          %s328 = smul.addr %s327, 64
          %s329 = scalar_lea.hbm %s1, %s328
          %s331 = sshll.u32 %s323, 4
          %s332 = int_to_ptr.vmem [resolvable:$true] %s331
          %334 = dma.hbm_to_vmem [thread:$0]  %s329, 128, %s332, %s320
        $region48: #{tpu_custom_call.1} parent=43 // pred_fallthru
          _
        // Predicated region
        $region49: #{tpu_custom_call.1} parent=43 // pred_check
          %p335 = pneg %p153
        $region50: #{tpu_custom_call.1} parent=43 // pred_check_branch
          %337 = sbr.rel (%p335) target = $region52
        $region51: #{tpu_custom_call.1} parent=43 // pred_region
          %p338 = scmp.lt.s32.totalorder %s23, 1
          %s339 = scalar_select %p338, %s23, 1
          %s340 = smul.addr %s339, 8
          %s341 = scalar_lea.vmem %s5, %s340
        $region52: #{tpu_custom_call.1} parent=43 // pred_fallthru
          _
      $region44: #{tpu_custom_call.1} parent=5 // pred_fallthru
        _
      %p342 = scmp.le.s32.totalorder 1, %s23
      %p343 = scmp.lt.s32.totalorder %s23, 3
      %p344 = pnand %p342, %p343
      %p345 = pneg %p344
      // Predicated region
      $region53: #{tpu_custom_call.1} parent=5 // pred_check
        _
      $region54: #{tpu_custom_call.1} parent=5 // pred_check_branch
        %347 = sbr.rel (%p344) target = $region56
      $region55: #{tpu_custom_call.1} parent=5 // pred_region
        %s348 = ssub.s32 %s23, 1
        %s349 = sand.u32 %s57, 1
        %s350 = scalar_lea.sflag [#allocation3], %s349
        %s351 = sand.u32 %s57, 1
        %s352 = smul.addr %s351, 8
        %s353 = scalar_lea.vmem [#allocation2], %s352
        // Predicated region
        $region57: #{tpu_custom_call.1} parent=55 // pred_check
          %p354 = pneg %p70
        $region58: #{tpu_custom_call.1} parent=55 // pred_check_branch
          %356 = sbr.rel (%p354) target = $region60
        $region59: #{tpu_custom_call.1} parent=55 // pred_region
          %357 = dma.done %s350, 128
        $region60: #{tpu_custom_call.1} parent=55 // pred_fallthru
          _
        // Predicated region
        $region61: #{tpu_custom_call.1} parent=55 // pred_check
          %p358 = pneg %p112
        $region62: #{tpu_custom_call.1} parent=55 // pred_check_branch
          %360 = sbr.rel (%p358) target = $region64
        $region63: #{tpu_custom_call.1} parent=55 // pred_region
          %361 = dma.done [#allocation6], 8192
        $region64: #{tpu_custom_call.1} parent=55 // pred_fallthru
          _
        // Predicated region
        $region65: #{tpu_custom_call.1} parent=55 // pred_check
          %p362 = pneg %p133
        $region66: #{tpu_custom_call.1} parent=55 // pred_check_branch
          %364 = sbr.rel (%p362) target = $region68
        $region67: #{tpu_custom_call.1} parent=55 // pred_region
          %365 = dma.done [#allocation6], 128
        $region68: #{tpu_custom_call.1} parent=55 // pred_fallthru
          _
        // Predicated region
        $region69: #{tpu_custom_call.1} parent=55 // pred_check
          %p366 = pneg %p201
        $region70: #{tpu_custom_call.1} parent=55 // pred_check_branch
          %368 = sbr.rel (%p366) target = $region72
        $region71: #{tpu_custom_call.1} parent=55 // pred_region
          %369 = dma.done [#allocation9], 2048
        $region72: #{tpu_custom_call.1} parent=55 // pred_fallthru
          _
        %p370 = pneg %p44
        %p371 = pneg %p41
        %s372 = sand.u32 %s57, 1
        %s373 = scalar_lea.sflag [#allocation3], %s372
        %s374 = sand.u32 %s57, 1
        %s375 = smul.addr %s374, 8
        %s376 = scalar_lea.vmem [#allocation2], %s375
        %p377 = pneg %p70
        %p378 = pneg %p67
        %p379 = pneg %p91
        %p380 = pneg %p88
        %p381 = pneg %p112
        %p382 = pneg %p109
        %p383 = pneg %p133
        %p384 = pneg %p130
        %p385 = scmp.lt.s32.totalorder %s28, 1
        %s386 = scalar_select %p385, %s28, 1
        %s387 = smul.addr %s386, 8
        %s388 = scalar_lea.vmem %s5, %s387
        %p389 = pneg %p159
        %p390 = pneg %p156
        %p391 = pneg %p180
        %p392 = pneg %p177
        %p393 = pneg %p201
        %p394 = pneg %p198
        %p395 = pneg %p222
        %p396 = pneg %p219
        %p397 = pneg %p248
        %p398 = pneg %p245
        %s399 = sand.u32 %s235, 1
        %s400 = scalar_lea.sflag [#allocation4], %s399
        %s401 = sand.u32 %s235, 1
        %s402 = smul.addr %s401, 48
        %s403 = scalar_lea.vmem [#allocation10], %s402
        %p404 = scmp.lt.s32.totalorder %s28, 1
        %s405 = scalar_select %p404, %s28, 1
        %s406 = smul.addr %s405, 8
        %s407 = scalar_lea.vmem %s5, %s406
        %v408 = vld [vmem:[%s0] sm:$0xff]
        %v409 = vld [vmem:[%s353] sm:$0xff]
        %v410 = vld [vmem:[%s2] sm:$0xff]
        %v411 = vld [vmem:[#allocation5] sm:$0xff]
        %v412 = vld [vmem:[#allocation5 + $0x8] sm:$0xff]
        %v413 = vld [vmem:[#allocation5 + $0x10] sm:$0xff]
        %v414 = vld [vmem:[#allocation5 + $0x18] sm:$0xff]
        %v415 = vld [vmem:[#allocation5 + $0x20] sm:$0xff]
        %v416 = vld [vmem:[#allocation5 + $0x28] sm:$0xff]
        %v417 = vld [vmem:[#allocation5 + $0x30] sm:$0xff]
        %v418 = vld [vmem:[#allocation5 + $0x38] sm:$0xff]
        %v419 = vld [vmem:[#allocation5 + $0x40] sm:$0xff]
        %v420 = vld [vmem:[#allocation5 + $0x48] sm:$0xff]
        %v421 = vld [vmem:[#allocation5 + $0x50] sm:$0xff]
        %v422 = vld [vmem:[#allocation5 + $0x58] sm:$0xff]
        %v423 = vld [vmem:[#allocation5 + $0x60] sm:$0xff]
        %v424 = vld [vmem:[#allocation5 + $0x68] sm:$0xff]
        %v425 = vld [vmem:[#allocation5 + $0x70] sm:$0xff]
        %v426 = vld [vmem:[#allocation5 + $0x78] sm:$0xff]
        %v427 = vld [vmem:[#allocation5 + $0x80] sm:$0xff]
        %v428 = vld [vmem:[#allocation5 + $0x88] sm:$0xff]
        %v429 = vld [vmem:[#allocation5 + $0x90] sm:$0xff]
        %v430 = vld [vmem:[#allocation5 + $0x98] sm:$0xff]
        %v431 = vld [vmem:[#allocation5 + $0xa0] sm:$0xff]
        %v432 = vld [vmem:[#allocation5 + $0xa8] sm:$0xff]
        %v433 = vld [vmem:[#allocation5 + $0xb0] sm:$0xff]
        %v434 = vld [vmem:[#allocation5 + $0xb8] sm:$0xff]
        %v435 = vld [vmem:[#allocation5 + $0xc0] sm:$0xff]
        %v436 = vld [vmem:[#allocation5 + $0xc8] sm:$0xff]
        %v437 = vld [vmem:[#allocation5 + $0xd0] sm:$0xff]
        %v438 = vld [vmem:[#allocation5 + $0xd8] sm:$0xff]
        %v439 = vld [vmem:[#allocation5 + $0xe0] sm:$0xff]
        %v440 = vld [vmem:[#allocation5 + $0xe8] sm:$0xff]
        %v441 = vld [vmem:[#allocation5 + $0xf0] sm:$0xff]
        %v442 = vld [vmem:[#allocation5 + $0xf8] sm:$0xff]
        %v443 = vld [vmem:[#allocation5 + $0x100] sm:$0xff]
        %v444 = vld [vmem:[#allocation5 + $0x108] sm:$0xff]
        %v445 = vld [vmem:[#allocation5 + $0x110] sm:$0xff]
        %v446 = vld [vmem:[#allocation5 + $0x118] sm:$0xff]
        %v447 = vld [vmem:[#allocation5 + $0x120] sm:$0xff]
        %v448 = vld [vmem:[#allocation5 + $0x128] sm:$0xff]
        %v449 = vld [vmem:[#allocation5 + $0x130] sm:$0xff]
        %v450 = vld [vmem:[#allocation5 + $0x138] sm:$0xff]
        %v451 = vld [vmem:[#allocation5 + $0x140] sm:$0xff]
        %v452 = vld [vmem:[#allocation5 + $0x148] sm:$0xff]
        %v453 = vld [vmem:[#allocation5 + $0x150] sm:$0xff]
        %v454 = vld [vmem:[#allocation5 + $0x158] sm:$0xff]
        %v455 = vld [vmem:[#allocation5 + $0x160] sm:$0xff]
        %v456 = vld [vmem:[#allocation5 + $0x168] sm:$0xff]
        %v457 = vld [vmem:[#allocation5 + $0x170] sm:$0xff]
        %v458 = vld [vmem:[#allocation5 + $0x178] sm:$0xff]
        %v459 = vld [vmem:[#allocation5 + $0x180] sm:$0xff]
        %v460 = vld [vmem:[#allocation5 + $0x188] sm:$0xff]
        %v461 = vld [vmem:[#allocation5 + $0x190] sm:$0xff]
        %v462 = vld [vmem:[#allocation5 + $0x198] sm:$0xff]
        %v463 = vld [vmem:[#allocation5 + $0x1a0] sm:$0xff]
        %v464 = vld [vmem:[#allocation5 + $0x1a8] sm:$0xff]
        %v465 = vld [vmem:[#allocation5 + $0x1b0] sm:$0xff]
        %v466 = vld [vmem:[#allocation5 + $0x1b8] sm:$0xff]
        %v467 = vld [vmem:[#allocation5 + $0x1c0] sm:$0xff]
        %v468 = vld [vmem:[#allocation5 + $0x1c8] sm:$0xff]
        %v469 = vld [vmem:[#allocation5 + $0x1d0] sm:$0xff]
        %v470 = vld [vmem:[#allocation5 + $0x1d8] sm:$0xff]
        %v471 = vld [vmem:[#allocation5 + $0x1e0] sm:$0xff]
        %v472 = vld [vmem:[#allocation5 + $0x1e8] sm:$0xff]
        %v473 = vld [vmem:[#allocation5 + $0x1f0] sm:$0xff]
        %v474 = vld [vmem:[#allocation5 + $0x1f8] sm:$0xff]
        %v475 = vld [vmem:[#allocation7] sm:$0xff]
        %477 = vset.pattern.permute.xlu0 5
        %478 = vperm.xlu0 %477, %v408
        %v479 = vpop.permute.xlu0 %478
        %v482 = vcombine.high %v409, %v409
        %vm483 = vcmask 31744
        %v485 = vsel %vm483, %v410, 0
        %vm487 = vcmask 1043456
        %v488 = vsel %vm487, %v409, 0
        %v490 = vsel %vm487, %v482, 0
        %492 = vmatprep.subr.mxu0 %v490
        %493 = vmatpush1.msra.mxu0 %v488
        %494 = vmatprep.subr.mxu0 0.0
        %495 = vmatpush1.msra.mxu0 0.0
        %496 = vmatprep.subr.mxu0 0.0
        %497 = vmatpush1.msra.mxu0 0.0
        %498 = vmatprep.subr.mxu0 0.0
        %499 = vmatpush1.msra.mxu0 0.0
        %500 = vmatprep.subr.mxu0 0.0
        %501 = vmatpush1.msra.mxu0 0.0
        %502 = vmatprep.subr.mxu0 0.0
        %503 = vmatpush1.msra.mxu0 0.0
        %504 = vmatprep.subr.mxu0 0.0
        %505 = vmatpush1.msra.mxu0 0.0
        %506 = vmatprep.subr.mxu0 0.0
        %507 = vmatpush1.msra.mxu0 0.0
        %508 = vmatprep.subr.mxu0 0.0
        %509 = vmatpush1.msra.mxu0 0.0
        %510 = vmatprep.subr.mxu0 0.0
        %511 = vmatpush1.msra.mxu0 0.0
        %512 = vmatprep.subr.mxu0 0.0
        %513 = vmatpush1.msra.mxu0 0.0
        %514 = vmatprep.subr.mxu0 0.0
        %515 = vmatpush1.msra.mxu0 0.0
        %516 = vmatprep.subr.mxu0 0.0
        %517 = vmatpush1.msra.mxu0 0.0
        %518 = vmatprep.subr.mxu0 0.0
        %519 = vmatpush1.msra.mxu0 0.0
        %520 = vmatprep.subr.mxu0 0.0
        %521 = vmatpush1.msra.mxu0 0.0
        %522 = vmatprep.subr.mxu0 0.0
        %523 = vmatpush1.msra.mxu0 0.0
        %524 = vmatprep.subr.mxu0 0.0
        %525 = vmatpush1.msra.mxu0 0.0
        %526 = vmatprep.subr.mxu0 0.0
        %527 = vmatpush1.msra.mxu0 0.0
        %528 = vmatprep.subr.mxu0 0.0
        %529 = vmatpush1.msra.mxu0 0.0
        %530 = vmatprep.subr.mxu0 0.0
        %531 = vmatpush1.msra.mxu0 0.0
        %532 = vmatprep.subr.mxu0 0.0
        %533 = vmatpush1.msra.mxu0 0.0
        %534 = vmatprep.subr.mxu0 0.0
        %535 = vmatpush1.msra.mxu0 0.0
        %536 = vmatprep.subr.mxu0 0.0
        %537 = vmatpush1.msra.mxu0 0.0
        %538 = vmatprep.subr.mxu0 0.0
        %539 = vmatpush1.msra.mxu0 0.0
        %540 = vmatprep.subr.mxu0 0.0
        %541 = vmatpush1.msra.mxu0 0.0
        %542 = vmatprep.subr.mxu0 0.0
        %543 = vmatpush1.msra.mxu0 0.0
        %544 = vmatprep.subr.mxu0 0.0
        %545 = vmatpush1.msra.mxu0 0.0
        %546 = vmatprep.subr.mxu0 0.0
        %547 = vmatpush1.msra.mxu0 0.0
        %548 = vmatprep.subr.mxu0 0.0
        %549 = vmatpush1.msra.mxu0 0.0
        %550 = vmatprep.subr.mxu0 0.0
        %551 = vmatpush1.msra.mxu0 0.0
        %552 = vmatprep.subr.mxu0 0.0
        %553 = vmatpush1.msra.mxu0 0.0
        %554 = vmatprep.subr.mxu0 0.0
        %555 = vmatpush1.msra.mxu0 0.0
        %556 = vmatprep.mubr.f32.mxu0 0.0
        %557 = vmatmul.mubr.f32.gmra.mrb[0].mxu0 %v485
        %v558 = vpop.f32.mrb[0].mxu0
        %v559 = vadd.f32 %v479, %v558
        %v560 = vpop.f32.mrb[0].mxu0
        %v561 = vadd.f32 %v479, %v560
        %562 = vdwg.mxu0
        %v563 = vadd.f32 %v559, %v561
        %564 = vadd.xlane.f32.xlu0 %v563
        %v565 = vpop.xlane.xlu0 %564
        %v566 = vrot.slane %v565, 4
        %v567 = vadd.f32 %v565, %v566
        %v568 = vrot.slane %v567, 2
        %v569 = vadd.f32 %v567, %v568
        %v570 = vrot.slane %v569, 1
        %v571 = vadd.f32 %v569, %v570
        %s572 = vtos %v571
        %v573 = vrcp.pop 2048.0
        %s574 = vtos %v573
        %s575 = smul.f32 %s572, %s574
        %v576 = vstv %s575
        %v577 = vsub.f32 %v559, %v576
        %v578 = vsub.f32 %v561, %v576
        %v579 = vmul.f32 %v577, %v577
        %v580 = vmul.f32 %v578, %v578
        %v581 = vadd.f32 %v579, %v580
        %582 = vadd.xlane.f32.xlu0 %v581
        %v583 = vpop.xlane.xlu0 %582
        %v584 = vrot.slane %v583, 4
        %v585 = vadd.f32 %v583, %v584
        %v586 = vrot.slane %v585, 2
        %v587 = vadd.f32 %v585, %v586
        %v588 = vrot.slane %v587, 1
        %v589 = vadd.f32 %v587, %v588
        %s590 = vtos %v589
        %v591 = vrcp.pop 2048.0
        %s592 = vtos %v591
        %s593 = smul.f32 %s590, %s592
        %s594 = sadd.f32 %s593, 1e-05
        %v595 = vstv %s594
        %v596 = vrsqrt.pop %v595
        %s597 = vtos %v596
        %v598 = vstv %s597
        %v599 = vmul.f32 %v598, %v408
        %601 = vset.pattern.permute.xlu0 0
        %602 = vperm.xlu0 %601, %v599
        %v603 = vpop.permute.xlu0 %602
        %v605 = vmul.f32 %v577, %v603
        %v606 = vmul.f32 %v578, %v603
        %607 = vset.pattern.permute.xlu0 1
        %608 = vperm.xlu0 %607, %v408
        %v609 = vpop.permute.xlu0 %608
        %v611 = vadd.f32 %v605, %v609
        %v612 = vadd.f32 %v606, %v609
        %vm613 = vcmp.ge.f32.partialorder %v611, 0.0
        %vm614 = vcmp.ge.f32.partialorder %v612, 0.0
        %615 = vset.pattern.permute.xlu0 2
        %616 = vperm.xlu0 %615, %v408
        %v617 = vpop.permute.xlu0 %616
        %v619 = vmul.f32 %v617, %v611
        %v620 = vmul.f32 %v617, %v612
        %v621 = vsel %vm613, %v611, %v619
        %v622 = vsel %vm614, %v612, %v620
        %623 = vmatprep.subr.mxu0 %v412
        %624 = vmatpush1.msra.mxu0 %v411
        %625 = vmatprep.subr.mxu0 %v414
        %626 = vmatpush1.msra.mxu0 %v413
        %627 = vmatprep.subr.mxu0 %v416
        %628 = vmatpush1.msra.mxu0 %v415
        %629 = vmatprep.subr.mxu0 %v418
        %630 = vmatpush1.msra.mxu0 %v417
        %631 = vmatprep.subr.mxu0 %v420
        %632 = vmatpush1.msra.mxu0 %v419
        %633 = vmatprep.subr.mxu0 %v422
        %634 = vmatpush1.msra.mxu0 %v421
        %635 = vmatprep.subr.mxu0 %v424
        %636 = vmatpush1.msra.mxu0 %v423
        %637 = vmatprep.subr.mxu0 %v426
        %638 = vmatpush1.msra.mxu0 %v425
        %639 = vmatprep.subr.mxu0 %v428
        %640 = vmatpush1.msra.mxu0 %v427
        %641 = vmatprep.subr.mxu0 %v430
        %642 = vmatpush1.msra.mxu0 %v429
        %643 = vmatprep.subr.mxu0 %v432
        %644 = vmatpush1.msra.mxu0 %v431
        %645 = vmatprep.subr.mxu0 %v434
        %646 = vmatpush1.msra.mxu0 %v433
        %647 = vmatprep.subr.mxu0 %v436
        %648 = vmatpush1.msra.mxu0 %v435
        %649 = vmatprep.subr.mxu0 %v438
        %650 = vmatpush1.msra.mxu0 %v437
        %651 = vmatprep.subr.mxu0 %v440
        %652 = vmatpush1.msra.mxu0 %v439
        %653 = vmatprep.subr.mxu0 %v442
        %654 = vmatpush1.msra.mxu0 %v441
        %655 = vmatprep.subr.mxu0 %v444
        %656 = vmatpush1.msra.mxu0 %v443
        %657 = vmatprep.subr.mxu0 %v446
        %658 = vmatpush1.msra.mxu0 %v445
        %659 = vmatprep.subr.mxu0 %v448
        %660 = vmatpush1.msra.mxu0 %v447
        %661 = vmatprep.subr.mxu0 %v450
        %662 = vmatpush1.msra.mxu0 %v449
        %663 = vmatprep.subr.mxu0 %v452
        %664 = vmatpush1.msra.mxu0 %v451
        %665 = vmatprep.subr.mxu0 %v454
        %666 = vmatpush1.msra.mxu0 %v453
        %667 = vmatprep.subr.mxu0 %v456
        %668 = vmatpush1.msra.mxu0 %v455
        %669 = vmatprep.subr.mxu0 %v458
        %670 = vmatpush1.msra.mxu0 %v457
        %671 = vmatprep.subr.mxu0 %v460
        %672 = vmatpush1.msra.mxu0 %v459
        %673 = vmatprep.subr.mxu0 %v462
        %674 = vmatpush1.msra.mxu0 %v461
        %675 = vmatprep.subr.mxu0 %v464
        %676 = vmatpush1.msra.mxu0 %v463
        %677 = vmatprep.subr.mxu0 %v466
        %678 = vmatpush1.msra.mxu0 %v465
        %679 = vmatprep.subr.mxu0 %v468
        %680 = vmatpush1.msra.mxu0 %v467
        %681 = vmatprep.subr.mxu0 %v470
        %682 = vmatpush1.msra.mxu0 %v469
        %683 = vmatprep.subr.mxu0 %v472
        %684 = vmatpush1.msra.mxu0 %v471
        %685 = vmatprep.subr.mxu0 %v474
        %686 = vmatpush1.msra.mxu0 %v473
        %687 = vmatprep.mubr.f32.mxu0 %v622
        %688 = vmatmul.mubr.f32.gmra.mrb[0].mxu0 %v621
        %v689 = vpop.f32.mrb[0].mxu0
        %v690 = vadd.f32 0.0, %v689
        %v691 = vpop.f32.mrb[0].mxu0
        %v692 = vadd.f32 0.0, %v691
        %693 = vdwg.mxu0
        %694 = vst [vmem:[%s403] sm:$0xff] %v690
        %695 = vst [vmem:[%s403 + $0x8] sm:$0xff] %v692
        %v696 = vld [vmem:[%s407] sm:$0xff]
        %v697 = vld [vmem:[%s6] sm:$0xff]
        %v698 = vld [vmem:[#allocation8] sm:$0xff]
        %v699 = vld [vmem:[#allocation8 + $0x8] sm:$0xff]
        %v700 = vld [vmem:[#allocation8 + $0x10] sm:$0xff]
        %v701 = vld [vmem:[#allocation8 + $0x18] sm:$0xff]
        %v702 = vld [vmem:[#allocation8 + $0x20] sm:$0xff]
        %v703 = vld [vmem:[#allocation8 + $0x28] sm:$0xff]
        %v704 = vld [vmem:[#allocation8 + $0x30] sm:$0xff]
        %v705 = vld [vmem:[#allocation8 + $0x38] sm:$0xff]
        %v706 = vld [vmem:[#allocation8 + $0x40] sm:$0xff]
        %v707 = vld [vmem:[#allocation8 + $0x48] sm:$0xff]
        %v708 = vld [vmem:[#allocation8 + $0x50] sm:$0xff]
        %v709 = vld [vmem:[#allocation8 + $0x58] sm:$0xff]
        %v710 = vld [vmem:[#allocation8 + $0x60] sm:$0xff]
        %v711 = vld [vmem:[#allocation8 + $0x68] sm:$0xff]
        %v712 = vld [vmem:[#allocation8 + $0x70] sm:$0xff]
        %v713 = vld [vmem:[#allocation8 + $0x78] sm:$0xff]
        %v714 = vld [vmem:[%s8] sm:$0xff]
        %v715 = vld [vmem:[%s0] sm:$0xff]
        %717 = vset.pattern.permute.xlu0 6
        %718 = vperm.xlu0 %717, %v715
        %v719 = vpop.permute.xlu0 %718
        %vm721 = vcmask 64512
        %v723 = vsel %vm721, %v697, 0
        %725 = vmatprep.subr.mxu0 0.0
        %726 = vmatpush1.msra.mxu0 %v696
        %727 = vmatprep.subr.mxu0 0.0
        %728 = vmatpush1.msra.mxu0 0.0
        %729 = vmatprep.subr.mxu0 0.0
        %730 = vmatpush1.msra.mxu0 0.0
        %731 = vmatprep.subr.mxu0 0.0
        %732 = vmatpush1.msra.mxu0 0.0
        %733 = vmatprep.subr.mxu0 0.0
        %734 = vmatpush1.msra.mxu0 0.0
        %735 = vmatprep.subr.mxu0 0.0
        %736 = vmatpush1.msra.mxu0 0.0
        %737 = vmatprep.subr.mxu0 0.0
        %738 = vmatpush1.msra.mxu0 0.0
        %739 = vmatprep.subr.mxu0 0.0
        %740 = vmatpush1.msra.mxu0 0.0
        %741 = vmatprep.subr.mxu0 0.0
        %742 = vmatpush1.msra.mxu0 0.0
        %743 = vmatprep.subr.mxu0 0.0
        %744 = vmatpush1.msra.mxu0 0.0
        %745 = vmatprep.subr.mxu0 0.0
        %746 = vmatpush1.msra.mxu0 0.0
        %747 = vmatprep.subr.mxu0 0.0
        %748 = vmatpush1.msra.mxu0 0.0
        %749 = vmatprep.subr.mxu0 0.0
        %750 = vmatpush1.msra.mxu0 0.0
        %751 = vmatprep.subr.mxu0 0.0
        %752 = vmatpush1.msra.mxu0 0.0
        %753 = vmatprep.subr.mxu0 0.0
        %754 = vmatpush1.msra.mxu0 0.0
        %755 = vmatprep.subr.mxu0 0.0
        %756 = vmatpush1.msra.mxu0 0.0
        %757 = vmatprep.subr.mxu0 0.0
        %758 = vmatpush1.msra.mxu0 0.0
        %759 = vmatprep.subr.mxu0 0.0
        %760 = vmatpush1.msra.mxu0 0.0
        %761 = vmatprep.subr.mxu0 0.0
        %762 = vmatpush1.msra.mxu0 0.0
        %763 = vmatprep.subr.mxu0 0.0
        %764 = vmatpush1.msra.mxu0 0.0
        %765 = vmatprep.subr.mxu0 0.0
        %766 = vmatpush1.msra.mxu0 0.0
        %767 = vmatprep.subr.mxu0 0.0
        %768 = vmatpush1.msra.mxu0 0.0
        %769 = vmatprep.subr.mxu0 0.0
        %770 = vmatpush1.msra.mxu0 0.0
        %771 = vmatprep.subr.mxu0 0.0
        %772 = vmatpush1.msra.mxu0 0.0
        %773 = vmatprep.subr.mxu0 0.0
        %774 = vmatpush1.msra.mxu0 0.0
        %775 = vmatprep.subr.mxu0 0.0
        %776 = vmatpush1.msra.mxu0 0.0
        %777 = vmatprep.subr.mxu0 0.0
        %778 = vmatpush1.msra.mxu0 0.0
        %779 = vmatprep.subr.mxu0 0.0
        %780 = vmatpush1.msra.mxu0 0.0
        %781 = vmatprep.subr.mxu0 0.0
        %782 = vmatpush1.msra.mxu0 0.0
        %783 = vmatprep.subr.mxu0 0.0
        %784 = vmatpush1.msra.mxu0 0.0
        %785 = vmatprep.subr.mxu0 0.0
        %786 = vmatpush1.msra.mxu0 0.0
        %787 = vmatprep.subr.mxu0 0.0
        %788 = vmatpush1.msra.mxu0 0.0
        %789 = vmatprep.mubr.f32.mxu0 0.0
        %790 = vmatmul.mubr.f32.gmra.mrb[0].mxu0 %v723
        %v791 = vpop.f32.mrb[0].mxu0
        %v792 = vadd.f32 %v719, %v791
        %v793 = vpop.f32.mrb[0].mxu0
        %794 = vdwg.mxu0
        %vm795 = vcmask 523264
        %v796 = vsel %vm795, %v792, 0.0
        %797 = vadd.xlane.f32.xlu0 %v796
        %v798 = vpop.xlane.xlu0 %797
        %v799 = vrot.slane %v798, 4
        %v800 = vadd.f32 %v798, %v799
        %v801 = vrot.slane %v800, 2
        %v802 = vadd.f32 %v800, %v801
        %v803 = vrot.slane %v802, 1
        %v804 = vadd.f32 %v802, %v803
        %s805 = vtos %v804
        %v806 = vrcp.pop 512.0
        %s807 = vtos %v806
        %s808 = smul.f32 %s805, %s807
        %v809 = vstv %s808
        %v810 = vsub.f32 %v792, %v809
        %v811 = vmul.f32 %v810, %v810
        %v812 = vsel %vm795, %v811, 0.0
        %813 = vadd.xlane.f32.xlu0 %v812
        %v814 = vpop.xlane.xlu0 %813
        %v815 = vrot.slane %v814, 4
        %v816 = vadd.f32 %v814, %v815
        %v817 = vrot.slane %v816, 2
        %v818 = vadd.f32 %v816, %v817
        %v819 = vrot.slane %v818, 1
        %v820 = vadd.f32 %v818, %v819
        %s821 = vtos %v820
        %v822 = vrcp.pop 512.0
        %s823 = vtos %v822
        %s824 = smul.f32 %s821, %s823
        %s825 = sadd.f32 %s824, 1e-05
        %v826 = vstv %s825
        %v827 = vrsqrt.pop %v826
        %s828 = vtos %v827
        %v829 = vstv %s828
        %v830 = vmul.f32 %v829, %v408
        %832 = vset.pattern.permute.xlu0 0
        %833 = vperm.xlu0 %832, %v830
        %v834 = vpop.permute.xlu0 %833
        %v836 = vmul.f32 %v810, %v834
        %v837 = vadd.f32 %v836, %v609
        %vm838 = vcmp.ge.f32.partialorder %v837, 0.0
        %v839 = vmul.f32 %v617, %v837
        %v840 = vsel %vm838, %v837, %v839
        %v842 = vsel %vm795, %v840, 0
        %844 = vmatprep.subr.mxu0 %v699
        %845 = vmatpush1.msra.mxu0 %v698
        %846 = vmatprep.subr.mxu0 %v701
        %847 = vmatpush1.msra.mxu0 %v700
        %848 = vmatprep.subr.mxu0 %v703
        %849 = vmatpush1.msra.mxu0 %v702
        %850 = vmatprep.subr.mxu0 %v705
        %851 = vmatpush1.msra.mxu0 %v704
        %852 = vmatprep.subr.mxu0 %v707
        %853 = vmatpush1.msra.mxu0 %v706
        %854 = vmatprep.subr.mxu0 %v709
        %855 = vmatpush1.msra.mxu0 %v708
        %856 = vmatprep.subr.mxu0 %v711
        %857 = vmatpush1.msra.mxu0 %v710
        %858 = vmatprep.subr.mxu0 %v713
        %859 = vmatpush1.msra.mxu0 %v712
        %860 = vmatprep.subr.mxu0 0.0
        %861 = vmatpush1.msra.mxu0 0.0
        %862 = vmatprep.subr.mxu0 0.0
        %863 = vmatpush1.msra.mxu0 0.0
        %864 = vmatprep.subr.mxu0 0.0
        %865 = vmatpush1.msra.mxu0 0.0
        %866 = vmatprep.subr.mxu0 0.0
        %867 = vmatpush1.msra.mxu0 0.0
        %868 = vmatprep.subr.mxu0 0.0
        %869 = vmatpush1.msra.mxu0 0.0
        %870 = vmatprep.subr.mxu0 0.0
        %871 = vmatpush1.msra.mxu0 0.0
        %872 = vmatprep.subr.mxu0 0.0
        %873 = vmatpush1.msra.mxu0 0.0
        %874 = vmatprep.subr.mxu0 0.0
        %875 = vmatpush1.msra.mxu0 0.0
        %876 = vmatprep.subr.mxu0 0.0
        %877 = vmatpush1.msra.mxu0 0.0
        %878 = vmatprep.subr.mxu0 0.0
        %879 = vmatpush1.msra.mxu0 0.0
        %880 = vmatprep.subr.mxu0 0.0
        %881 = vmatpush1.msra.mxu0 0.0
        %882 = vmatprep.subr.mxu0 0.0
        %883 = vmatpush1.msra.mxu0 0.0
        %884 = vmatprep.subr.mxu0 0.0
        %885 = vmatpush1.msra.mxu0 0.0
        %886 = vmatprep.subr.mxu0 0.0
        %887 = vmatpush1.msra.mxu0 0.0
        %888 = vmatprep.subr.mxu0 0.0
        %889 = vmatpush1.msra.mxu0 0.0
        %890 = vmatprep.subr.mxu0 0.0
        %891 = vmatpush1.msra.mxu0 0.0
        %892 = vmatprep.subr.mxu0 0.0
        %893 = vmatpush1.msra.mxu0 0.0
        %894 = vmatprep.subr.mxu0 0.0
        %895 = vmatpush1.msra.mxu0 0.0
        %896 = vmatprep.subr.mxu0 0.0
        %897 = vmatpush1.msra.mxu0 0.0
        %898 = vmatprep.subr.mxu0 0.0
        %899 = vmatpush1.msra.mxu0 0.0
        %900 = vmatprep.subr.mxu0 0.0
        %901 = vmatpush1.msra.mxu0 0.0
        %902 = vmatprep.subr.mxu0 0.0
        %903 = vmatpush1.msra.mxu0 0.0
        %904 = vmatprep.subr.mxu0 0.0
        %905 = vmatpush1.msra.mxu0 0.0
        %906 = vmatprep.subr.mxu0 0.0
        %907 = vmatpush1.msra.mxu0 0.0
        %908 = vmatprep.mubr.f32.mxu0 0.0
        %909 = vmatmul.mubr.f32.gmra.mrb[0].mxu0 %v842
        %v910 = vpop.f32.mrb[0].mxu0
        %v911 = vadd.f32 0.0, %v910
        %v912 = vpop.f32.mrb[0].mxu0
        %v913 = vadd.f32 0.0, %v912
        %914 = vdwg.mxu0
        %915 = vst [vmem:[%s403 + $0x10] sm:$0xff] %v911
        %916 = vst [vmem:[%s403 + $0x18] sm:$0xff] %v913
        %v918 = vsel %vm721, %v714, 0
        %920 = vmatprep.subr.mxu0 %v913
        %921 = vmatpush1.msra.mxu0 %v911
        %922 = vmatprep.subr.mxu0 0.0
        %923 = vmatpush1.msra.mxu0 0.0
        %924 = vmatprep.subr.mxu0 0.0
        %925 = vmatpush1.msra.mxu0 0.0
        %926 = vmatprep.subr.mxu0 0.0
        %927 = vmatpush1.msra.mxu0 0.0
        %928 = vmatprep.subr.mxu0 0.0
        %929 = vmatpush1.msra.mxu0 0.0
        %930 = vmatprep.subr.mxu0 0.0
        %931 = vmatpush1.msra.mxu0 0.0
        %932 = vmatprep.subr.mxu0 0.0
        %933 = vmatpush1.msra.mxu0 0.0
        %934 = vmatprep.subr.mxu0 0.0
        %935 = vmatpush1.msra.mxu0 0.0
        %936 = vmatprep.subr.mxu0 0.0
        %937 = vmatpush1.msra.mxu0 0.0
        %938 = vmatprep.subr.mxu0 0.0
        %939 = vmatpush1.msra.mxu0 0.0
        %940 = vmatprep.subr.mxu0 0.0
        %941 = vmatpush1.msra.mxu0 0.0
        %942 = vmatprep.subr.mxu0 0.0
        %943 = vmatpush1.msra.mxu0 0.0
        %944 = vmatprep.subr.mxu0 0.0
        %945 = vmatpush1.msra.mxu0 0.0
        %946 = vmatprep.subr.mxu0 0.0
        %947 = vmatpush1.msra.mxu0 0.0
        %948 = vmatprep.subr.mxu0 0.0
        %949 = vmatpush1.msra.mxu0 0.0
        %950 = vmatprep.subr.mxu0 0.0
        %951 = vmatpush1.msra.mxu0 0.0
        %952 = vmatprep.subr.mxu0 0.0
        %953 = vmatpush1.msra.mxu0 0.0
        %954 = vmatprep.subr.mxu0 0.0
        %955 = vmatpush1.msra.mxu0 0.0
        %956 = vmatprep.subr.mxu0 0.0
        %957 = vmatpush1.msra.mxu0 0.0
        %958 = vmatprep.subr.mxu0 0.0
        %959 = vmatpush1.msra.mxu0 0.0
        %960 = vmatprep.subr.mxu0 0.0
        %961 = vmatpush1.msra.mxu0 0.0
        %962 = vmatprep.subr.mxu0 0.0
        %963 = vmatpush1.msra.mxu0 0.0
        %964 = vmatprep.subr.mxu0 0.0
        %965 = vmatpush1.msra.mxu0 0.0
        %966 = vmatprep.subr.mxu0 0.0
        %967 = vmatpush1.msra.mxu0 0.0
        %968 = vmatprep.subr.mxu0 0.0
        %969 = vmatpush1.msra.mxu0 0.0
        %970 = vmatprep.subr.mxu0 0.0
        %971 = vmatpush1.msra.mxu0 0.0
        %972 = vmatprep.subr.mxu0 0.0
        %973 = vmatpush1.msra.mxu0 0.0
        %974 = vmatprep.subr.mxu0 0.0
        %975 = vmatpush1.msra.mxu0 0.0
        %976 = vmatprep.subr.mxu0 0.0
        %977 = vmatpush1.msra.mxu0 0.0
        %978 = vmatprep.subr.mxu0 0.0
        %979 = vmatpush1.msra.mxu0 0.0
        %980 = vmatprep.subr.mxu0 0.0
        %981 = vmatpush1.msra.mxu0 0.0
        %982 = vmatprep.subr.mxu0 0.0
        %983 = vmatpush1.msra.mxu0 0.0
        %984 = vmatprep.mubr.f32.mxu0 0.0
        %985 = vmatmul.mubr.f32.gmra.mrb[0].mxu0 %v918
        %v986 = vpop.f32.mrb[0].mxu0
        %v987 = vadd.f32 0.0, %v986
        %v988 = vpop.f32.mrb[0].mxu0
        %v989 = vadd.f32 0.0, %v988
        %990 = vdwg.mxu0
        %v992 = vsel %vm721, %v475, 0
        %994 = vmatprep.subr.mxu0 %v692
        %995 = vmatpush1.msra.mxu0 %v690
        %996 = vmatprep.subr.mxu0 0.0
        %997 = vmatpush1.msra.mxu0 0.0
        %998 = vmatprep.subr.mxu0 0.0
        %999 = vmatpush1.msra.mxu0 0.0
        %1000 = vmatprep.subr.mxu0 0.0
        %1001 = vmatpush1.msra.mxu0 0.0
        %1002 = vmatprep.subr.mxu0 0.0
        %1003 = vmatpush1.msra.mxu0 0.0
        %1004 = vmatprep.subr.mxu0 0.0
        %1005 = vmatpush1.msra.mxu0 0.0
        %1006 = vmatprep.subr.mxu0 0.0
        %1007 = vmatpush1.msra.mxu0 0.0
        %1008 = vmatprep.subr.mxu0 0.0
        %1009 = vmatpush1.msra.mxu0 0.0
        %1010 = vmatprep.subr.mxu0 0.0
        %1011 = vmatpush1.msra.mxu0 0.0
        %1012 = vmatprep.subr.mxu0 0.0
        %1013 = vmatpush1.msra.mxu0 0.0
        %1014 = vmatprep.subr.mxu0 0.0
        %1015 = vmatpush1.msra.mxu0 0.0
        %1016 = vmatprep.subr.mxu0 0.0
        %1017 = vmatpush1.msra.mxu0 0.0
        %1018 = vmatprep.subr.mxu0 0.0
        %1019 = vmatpush1.msra.mxu0 0.0
        %1020 = vmatprep.subr.mxu0 0.0
        %1021 = vmatpush1.msra.mxu0 0.0
        %1022 = vmatprep.subr.mxu0 0.0
        %1023 = vmatpush1.msra.mxu0 0.0
        %1024 = vmatprep.subr.mxu0 0.0
        %1025 = vmatpush1.msra.mxu0 0.0
        %1026 = vmatprep.subr.mxu0 0.0
        %1027 = vmatpush1.msra.mxu0 0.0
        %1028 = vmatprep.subr.mxu0 0.0
        %1029 = vmatpush1.msra.mxu0 0.0
        %1030 = vmatprep.subr.mxu0 0.0
        %1031 = vmatpush1.msra.mxu0 0.0
        %1032 = vmatprep.subr.mxu0 0.0
        %1033 = vmatpush1.msra.mxu0 0.0
        %1034 = vmatprep.subr.mxu0 0.0
        %1035 = vmatpush1.msra.mxu0 0.0
        %1036 = vmatprep.subr.mxu0 0.0
        %1037 = vmatpush1.msra.mxu0 0.0
        %1038 = vmatprep.subr.mxu0 0.0
        %1039 = vmatpush1.msra.mxu0 0.0
        %1040 = vmatprep.subr.mxu0 0.0
        %1041 = vmatpush1.msra.mxu0 0.0
        %1042 = vmatprep.subr.mxu0 0.0
        %1043 = vmatpush1.msra.mxu0 0.0
        %1044 = vmatprep.subr.mxu0 0.0
        %1045 = vmatpush1.msra.mxu0 0.0
        %1046 = vmatprep.subr.mxu0 0.0
        %1047 = vmatpush1.msra.mxu0 0.0
        %1048 = vmatprep.subr.mxu0 0.0
        %1049 = vmatpush1.msra.mxu0 0.0
        %1050 = vmatprep.subr.mxu0 0.0
        %1051 = vmatpush1.msra.mxu0 0.0
        %1052 = vmatprep.subr.mxu0 0.0
        %1053 = vmatpush1.msra.mxu0 0.0
        %1054 = vmatprep.subr.mxu0 0.0
        %1055 = vmatpush1.msra.mxu0 0.0
        %1056 = vmatprep.subr.mxu0 0.0
        %1057 = vmatpush1.msra.mxu0 0.0
        %1058 = vmatprep.mubr.f32.mxu0 0.0
        %1059 = vmatmul.mubr.f32.gmra.mrb[0].mxu0 %v992
        %v1060 = vpop.f32.mrb[0].mxu0
        %v1061 = vadd.f32 %v987, %v1060
        %v1062 = vpop.f32.mrb[0].mxu0
        %v1063 = vadd.f32 %v989, %v1062
        %1064 = vdwg.mxu0
        %1065 = vset.pattern.permute.xlu0 3
        %1066 = vperm.xlu0 %1065, %v408
        %v1067 = vpop.permute.xlu0 %1066
        %v1069 = vadd.f32 %v1061, %v1067
        %v1070 = vadd.f32 %v1063, %v1067
        %vm1071 = vcmp.ge.f32.partialorder %v1069, 0.0
        %vm1072 = vcmp.ge.f32.partialorder %v1070, 0.0
        %1073 = vset.pattern.permute.xlu0 4
        %1074 = vperm.xlu0 %1073, %v408
        %v1075 = vpop.permute.xlu0 %1074
        %v1077 = vmul.f32 %v1075, %v1069
        %v1078 = vmul.f32 %v1075, %v1070
        %v1079 = vsel %vm1071, %v1069, %v1077
        %v1080 = vsel %vm1072, %v1070, %v1078
        %1081 = vst [vmem:[%s403 + $0x20] sm:$0xff] %v1079
        %1082 = vst [vmem:[%s403 + $0x28] sm:$0xff] %v1080
        %s1083 = sand.u32 %s235, 1
        %s1084 = scalar_lea.sflag [#allocation4], %s1083
        %s1085 = sand.u32 %s235, 1
        %s1086 = smul.addr %s1085, 48
        %s1087 = scalar_lea.vmem [#allocation10], %s1086
        // Predicated region
        $region73: #{tpu_custom_call.1} parent=55 // pred_check
          %p1088 = pneg %p245
        $region74: #{tpu_custom_call.1} parent=55 // pred_check_branch
          %1090 = sbr.rel (%p1088) target = $region76
        $region75: #{tpu_custom_call.1} parent=55 // pred_region
          %s1092 = ssub.s32 768, 768
          %1093 = vsyncadd %s1084, %s1092
          %s1094 = smul.addr %s28, 6
          %s1095 = smul.addr %s1094, 128
          %s1096 = scalar_lea.hbm %s9, %s1095
          %s1097 = sshll.u32 %s1087, 4
          %s1098 = int_to_ptr.vmem [resolvable:$true] %s1097
          %1103 = dma.vmem_to_hbm [thread:$0]  %s1098, 768, %s1096, %s1084, 256, 256, 16
        $region76: #{tpu_custom_call.1} parent=55 // pred_fallthru
          _
      $region56: #{tpu_custom_call.1} parent=5 // pred_fallthru
        _
      %p1104 = scmp.le.s32.totalorder 2, %s23
      // Predicated region
      $region77: #{tpu_custom_call.1} parent=5 // pred_check
        %p1105 = pneg %p1104
      $region78: #{tpu_custom_call.1} parent=5 // pred_check_branch
        %1107 = sbr.rel (%p1105) target = $region80
      $region79: #{tpu_custom_call.1} parent=5 // pred_region
        %s1108 = ssub.s32 %s23, 2
        // Predicated region
        $region81: #{tpu_custom_call.1} parent=79 // pred_check
          %p1109 = pneg %p251
        $region82: #{tpu_custom_call.1} parent=79 // pred_check_branch
          %1111 = sbr.rel (%p1109) target = $region84
        $region83: #{tpu_custom_call.1} parent=79 // pred_region
          %s1112 = sand.u32 %s236, 1
          %s1113 = scalar_lea.sflag [#allocation4], %s1112
          %s1114 = sand.u32 %s236, 1
          %s1115 = smul.addr %s1114, 48
          %s1116 = scalar_lea.vmem [#allocation10], %s1115
          %1117 = dma.done %s1113, 768
        $region84: #{tpu_custom_call.1} parent=79 // pred_fallthru
          _
      $region80: #{tpu_custom_call.1} parent=5 // pred_fallthru
        _
    $region6: #{tpu_custom_call.1} parent=1 // loop_footer
      %s27 = sadd.s32 1, %s23
    $region7: #{tpu_custom_call.1} parent=1 // loop_footer_branch
      %22 = sbr.rel target = $region3
    $region8: #{tpu_custom_call.1} parent=1 // loop_exit
      _
    %1118 = vsyncpa [#allocation3], 1
    %s1119 = scalar_lea.sflag [#allocation3], 1
    %1120 = vsyncpa %s1119, 1
    %1121 = vsyncpa [#allocation6], 1
    %1122 = vsyncpa [#allocation9], 1
    %1123 = vsyncpa [#allocation4], 1
    %s1124 = scalar_lea.sflag [#allocation4], 1
    %1125 = vsyncpa %s1124, 1

</llo_original>
